<compile_context>
chip_gen: v7x
topology: tpu7x:2x2x1
jax: 0.10.0
libtpu: 0.0.40
codegen_flags: <defaults>
</compile_context>

<pallas_src>
import functools
import math

import jax
import jax.numpy as jnp
from jax.experimental import pallas as pl
from jax.experimental.pallas import tpu as pltpu


# RGB -> Y coefficients used by the module when toY=True (deterministic constant).
_Y_COEF = (65.481, 128.553, 24.966)
_EPS = 1e-8

# Total budget for pipelined input blocks: 2 inputs x 2 pipeline buffers x block VMEM.
# ~3 MiB per block is already ~roofline for HBM streaming and, together with in-kernel
# f32 temps, fits comfortably under a 32 MiB scoped-VMEM limit on v5e/v6e/v7x.
_BLOCK_BUDGET_BYTES = 12 * 1024 * 1024
_VMEM_LIMIT_BYTES = 32 * 1024 * 1024


def _round_up(x, m):
    return (x + m - 1) // m * m


def _cdiv(a, b):
    return -(-a // b)


def _choose_tiling(n, flat, itemsize, toy, budget):
    """Return (b_tile, chunk, n_chunks) for the per-sample squared-diff reduction.

    Invariants: block dims never exceed array dims; batch block dim is a multiple of
    8 or == n; lane block dim is a multiple of 128 or the full flat dim.  VMEM
    accounting includes sublane padding (3->8/16 for the toY channel dim, row padding
    for narrow dtypes).
    """
    per_block = max(budget // 4, 64 * 1024)      # one input block, one pipeline buffer
    sub = max(8, 32 // itemsize)                 # sublane granularity for this dtype
    flat128 = _round_up(flat, 128)               # lanes actually occupied in VMEM

    # VMEM bytes per batch row if one row carries the whole flattened sample.
    if toy:
        row_bytes = sub * itemsize * flat128     # (3 -> sub) sublane padding per sample
    else:
        row_bytes = itemsize * flat128

    rows_fit = (per_block // row_bytes) // 8 * 8
    if not toy:
        rows_fit = rows_fit // sub * sub         # keep the estimate exact after row padding

    if rows_fit >= 8:
        # Small images: whole sample per block (lane dim == full flat dim -> no mask),
        # batch as many samples per grid step as the budget allows.
        b_tile = n if n <= 8 else min(rows_fit, (n // 8) * 8)
        return b_tile, flat, 1

    # Large images: few rows per block, chunk the flattened dim in 128-multiples,
    # capped so no block starts or lies past the end of the array.
    b_tile = n if n < 8 else 8
    if toy:
        denom = b_tile * sub * itemsize
    else:
        denom = _round_up(b_tile, sub) * itemsize
    chunk = (per_block // denom) // 128 * 128
    chunk = max(128, min(chunk, (flat // 128) * 128))
    return b_tile, chunk, _cdiv(flat, chunk)


def _accumulate(sq, out_ref, acc_ref, *, cps, chunk, flat, need_mask):
    """Shared accumulate/epilogue. sq: (b_tile, chunk) squared diffs for this chunk."""
    k = pl.program_id(2)
    if need_mask:
        # Global (unclamped) chunk index; lanes past `flat` (ragged tail) or an entire
        # duplicated chunk (odd chunk count split across 2 halves) contribute zero.
        g = pl.program_id(1) * cps + k
        limit = flat - g * chunk
        lane = jax.lax.broadcasted_iota(jnp.int32, sq.shape, sq.ndim - 1)
        sq = jnp.where(lane < limit, sq, 0.0)
    acc_ref[...] += jnp.sum(sq, axis=-1, keepdims=True)

    @pl.when(k == cps - 1)
    def _():
        # Lane-dense 128-wide output block; wrapper reads lane 0.
        out_ref[...] = jnp.broadcast_to(acc_ref[...], out_ref.shape)


def _psnr_kernel(p_ref, t_ref, out_ref, acc_ref, *, cps, chunk, flat, need_mask):
    """Grid = (batch_tiles, n_splits, chunks_per_split); blocks (b_tile, chunk)."""
    @pl.when(pl.program_id(2) == 0)
    def _():
        acc_ref[...] = jnp.zeros_like(acc_ref)

    d = p_ref[...].astype(jnp.float32) - t_ref[...].astype(jnp.float32)
    _accumulate(d * d, out_ref, acc_ref,
                cps=cps, chunk=chunk, flat=flat, need_mask=need_mask)


def _psnr_kernel_toy(p_ref, t_ref, out_ref, acc_ref, *, cps, chunk, flat, need_mask):
    """Grid = (batch_tiles, n_splits, chunks_per_split); blocks (b_tile, 3, chunk)."""
    @pl.when(pl.program_id(2) == 0)
    def _():
        acc_ref[...] = jnp.zeros_like(acc_ref)

    d = p_ref[...].astype(jnp.float32) - t_ref[...].astype(jnp.float32)
    # ((p*coef).sum(c)+16)/255 - ((t*coef).sum(c)+16)/255 == sum_c (coef_c/255)*(p_c-t_c)
    c0, c1, c2 = (c / 255.0 for c in _Y_COEF)
    dy = d[:, 0, :] * c0 + d[:, 1, :] * c1 + d[:, 2, :] * c2
    _accumulate(dy * dy, out_ref, acc_ref,
                cps=cps, chunk=chunk, flat=flat, need_mask=need_mask)


def psnr_loss(pred, target, *, loss_weight: float = 1.0, toY: bool = False,
              block_budget_bytes: int | None = None):
    assert pred.ndim == 4, "expected NCHW input"
    assert pred.shape == target.shape
    N, C, H, W = pred.shape
    budget = _BLOCK_BUDGET_BYTES if block_budget_bytes is None else block_budget_bytes
    itemsize = pred.dtype.itemsize

    if toY:
        assert C == 3, "toY=True requires 3 input channels"
        flat = H * W
        p = pred.reshape(N, C, flat)      # free reshape for contiguous NCHW
        t = target.reshape(N, C, flat)
    else:
        flat = C * H * W
        p = pred.reshape(N, flat)
        t = target.reshape(N, flat)

    b_tile, chunk, n_chunks = _choose_tiling(N, flat, itemsize, toY, budget)
    batch_tiles = _cdiv(N, b_tile)
    # v7x megacore: if the batch axis alone can't feed both TensorCores, split the
    # chunk stream into 2 parallel halves.  Serial (and harmless) on v5e/v6e.
    n_splits = 2 if (batch_tiles == 1 and n_chunks >= 2) else 1
    cps = _cdiv(n_chunks, n_splits)                     # chunks per split
    need_mask = (chunk * n_chunks != flat) or (n_splits * cps != n_chunks)
    last_chunk = n_chunks - 1

    kw = dict(cps=cps, chunk=chunk, flat=flat, need_mask=need_mask)
    if toY:
        kernel = functools.partial(_psnr_kernel_toy, **kw)
        in_spec = pl.BlockSpec(
            (b_tile, C, chunk),
            lambda i, s, k: (i, 0, jnp.minimum(s * cps + k, last_chunk)))
    else:
        kernel = functools.partial(_psnr_kernel, **kw)
        in_spec = pl.BlockSpec(
            (b_tile, chunk),
            lambda i, s, k: (i, jnp.minimum(s * cps + k, last_chunk)))

    partial_sums = pl.pallas_call(
        kernel,
        out_shape=jax.ShapeDtypeStruct((N, n_splits * 128), jnp.float32),
        grid_spec=pltpu.PrefetchScalarGridSpec(
            num_scalar_prefetch=0,
            grid=(batch_tiles, n_splits, cps),
            in_specs=[in_spec, in_spec],
            out_specs=pl.BlockSpec((b_tile, 128), lambda i, s, k: (i, s)),
            scratch_shapes=[pltpu.VMEM((b_tile, 1), jnp.float32)],
        ),
        compiler_params=pltpu.CompilerParams(
            dimension_semantics=("parallel", "parallel", "arbitrary"),
            vmem_limit_bytes=_VMEM_LIMIT_BYTES,
        ),
        cost_estimate=pl.CostEstimate(
            flops=(10 if toY else 3) * N * flat,
            transcendentals=0,
            bytes_accessed=2 * pred.size * itemsize + N * n_splits * 128 * 4,
        ),
    )(p, t)

    # Tiny plain-JAX epilogue on N scalars: combine split partial sums, mean over the
    # per-sample pixel count, log, batch mean, scale.
    per_sample = partial_sums.reshape(N, n_splits, 128)[:, :, 0].sum(axis=1)
    mse = per_sample / float(flat)
    scale = 10.0 / math.log(10.0)
    return loss_weight * scale * jnp.mean(jnp.log(mse + _EPS))


def _reference_psnr_loss(pred, target, *, loss_weight=1.0, toY=False):
    """Pure-JAX reference mirroring the PyTorch forward."""
    p = pred.astype(jnp.float32)
    t = target.astype(jnp.float32)
    if toY:
        coef = jnp.asarray(_Y_COEF, dtype=jnp.float32).reshape(1, 3, 1, 1)
        p = (jnp.sum(p * coef, axis=1, keepdims=True) + 16.0) / 255.0
        t = (jnp.sum(t * coef, axis=1, keepdims=True) + 16.0) / 255.0
    scale = 10.0 / math.log(10.0)
    mse = jnp.mean((p - t) ** 2, axis=(1, 2, 3))
    return loss_weight * scale * jnp.mean(jnp.log(mse + _EPS))


if __name__ == "__main__":
    key = jax.random.PRNGKey(0)
    ks = jax.random.split(key, 12)

    def _check(name, got, want, tol=1e-5):
        got = jax.block_until_ready(got)
        want = jax.block_until_ready(want)
        assert jnp.allclose(got, want, rtol=tol, atol=tol), (name, got, want)

    # 1) Default path: whole-sample blocks, small batch of small images.
    pred = jax.random.uniform(ks[0], (2, 4, 16, 16), dtype=jnp.float32)
    target = jax.random.uniform(ks[1], (2, 4, 16, 16), dtype=jnp.float32)
    _check("basic", psnr_loss(pred, target), _reference_psnr_loss(pred, target))

    # 2) toY path (3-channel RGB -> Y).
    pred_y = jax.random.uniform(ks[2], (2, 3, 16, 16), dtype=jnp.float32)
    target_y = jax.random.uniform(ks[3], (2, 3, 16, 16), dtype=jnp.float32)
    _check("toY", psnr_loss(pred_y, target_y, toY=True),
           _reference_psnr_loss(pred_y, target_y, toY=True))

    # 3) Chunked + 2-way split + ragged-tail masking (forced via a tiny block budget).
    pred_l = jax.random.uniform(ks[4], (1, 3, 40, 40), dtype=jnp.float32)
    target_l = jax.random.uniform(ks[5], (1, 3, 40, 40), dtype=jnp.float32)
    _check("chunked+split",
           psnr_loss(pred_l, target_l, block_budget_bytes=256 * 1024),
           _reference_psnr_loss(pred_l, target_l))

    # 4) toY chunked path (also exercises the 2-way split).
    pred_ly = jax.random.uniform(ks[6], (1, 3, 64, 64), dtype=jnp.float32)
    target_ly = jax.random.uniform(ks[7], (1, 3, 64, 64), dtype=jnp.float32)
    _check("toY chunked",
           psnr_loss(pred_ly, target_ly, toY=True, block_budget_bytes=256 * 1024),
           _reference_psnr_loss(pred_ly, target_ly, toY=True))

    # 5) Partial last batch tile + non-128-multiple flat dim + loss_weight.
    pred_b = jax.random.uniform(ks[8], (10, 1, 8, 8), dtype=jnp.float32)
    target_b = jax.random.uniform(ks[9], (10, 1, 8, 8), dtype=jnp.float32)
    _check("ragged batch",
           psnr_loss(pred_b, target_b, loss_weight=0.5),
           _reference_psnr_loss(pred_b, target_b, loss_weight=0.5))

    # 6) bf16 inputs streamed at native width (cast to f32 only inside the kernel).
    pred_h = jax.random.uniform(ks[10], (2, 3, 16, 16), dtype=jnp.bfloat16)
    target_h = jax.random.uniform(ks[11], (2, 3, 16, 16), dtype=jnp.bfloat16)
    _check("bf16", psnr_loss(pred_h, target_h),
           _reference_psnr_loss(pred_h, target_h), tol=1e-4)

    print("KERNEL_OK")
</pallas_src>

<mosaic_0001>
module attributes {stable_mosaic.version = 11 : i64} {
  func.func @_psnr_kernel(%arg0: i32, %arg1: i32, %arg2: i32, %arg3: memref<2x1024xf32, #tpu.memory_space<vmem>>, %arg4: memref<2x1024xf32, #tpu.memory_space<vmem>>, %arg5: memref<2x128xf32, #tpu.memory_space<vmem>>, %arg6: memref<2x1xf32, #tpu.memory_space<vmem>>) attributes {dimension_semantics = [#tpu.dimension_semantics<parallel>, #tpu.dimension_semantics<parallel>, #tpu.dimension_semantics<arbitrary>], iteration_bounds = array<i64: 1, 1, 1>, scalar_prefetch = 0 : i64, scratch_operands = 1 : i64, tpu.core_type = #tpu.core_type<tc>, window_params = [{transform_indices = @transform_0, window_bounds = array<i64: 2, 1024>}, {transform_indices = @transform_1, window_bounds = array<i64: 2, 1024>}, {transform_indices = @transform_2, window_bounds = array<i64: 2, 128>}]} {
    %c0_i32 = arith.constant 0 : i32
    %0 = arith.cmpi eq, %arg2, %c0_i32 : i32
    %1 = arith.extui %0 : i1 to i32
    %c0_i32_0 = arith.constant 0 : i32
    %2 = arith.cmpi ne, %1, %c0_i32_0 : i32
    scf.if %2 {
      %cst_10 = arith.constant 0.000000e+00 : f32
      %15 = vector.broadcast %cst_10 : f32 to vector<2x1xf32>
      %c0_11 = arith.constant 0 : index
      %c0_12 = arith.constant 0 : index
      %16 = vector.load %arg6[%c0_11, %c0_12] : memref<2x1xf32, #tpu.memory_space<vmem>>, vector<2x1xf32>
      tpu.vector_store %arg6[%c0_11, %c0_12], %15 {strides = array<i32>} : memref<2x1xf32, #tpu.memory_space<vmem>>, vector<2x1xf32>,
    } else {
    }
    %c0 = arith.constant 0 : index
    %c0_1 = arith.constant 0 : index
    %3 = vector.load %arg3[%c0, %c0_1] : memref<2x1024xf32, #tpu.memory_space<vmem>>, vector<2x1024xf32>
    %c0_2 = arith.constant 0 : index
    %c0_3 = arith.constant 0 : index
    %4 = vector.load %arg4[%c0_2, %c0_3] : memref<2x1024xf32, #tpu.memory_space<vmem>>, vector<2x1024xf32>
    %5 = arith.subf %3, %4 : vector<2x1024xf32>
    %6 = arith.mulf %5, %5 : vector<2x1024xf32>
    %c0_4 = arith.constant 0 : index
    %c0_5 = arith.constant 0 : index
    %7 = vector.load %arg6[%c0_4, %c0_5] : memref<2x1xf32, #tpu.memory_space<vmem>>, vector<2x1xf32>
    %cst = arith.constant dense<0.000000e+00> : vector<2xf32>
    %8 = vector.multi_reduction <add>, %6, %cst [1] : vector<2x1024xf32> to vector<2xf32>
    %9 = vector.shape_cast %8 : vector<2xf32> to vector<2x1xf32>
    %10 = arith.addf %7, %9 : vector<2x1xf32>
    %c0_6 = arith.constant 0 : index
    %c0_7 = arith.constant 0 : index
    %11 = vector.load %arg6[%c0_6, %c0_7] : memref<2x1xf32, #tpu.memory_space<vmem>>, vector<2x1xf32>
    tpu.vector_store %arg6[%c0_6, %c0_7], %10 {strides = array<i32>} : memref<2x1xf32, #tpu.memory_space<vmem>>, vector<2x1xf32>,
    %c0_i32_8 = arith.constant 0 : i32
    %12 = arith.cmpi eq, %arg2, %c0_i32_8 : i32
    %13 = arith.extui %12 : i1 to i32
    %c0_i32_9 = arith.constant 0 : i32
    %14 = arith.cmpi ne, %13, %c0_i32_9 : i32
    scf.if %14 {
      %c0_10 = arith.constant 0 : index
      %c0_11 = arith.constant 0 : index
      %15 = vector.load %arg6[%c0_10, %c0_11] : memref<2x1xf32, #tpu.memory_space<vmem>>, vector<2x1xf32>
      %16 = vector.shape_cast %15 : vector<2x1xf32> to vector<2x1xf32>
      %17 = vector.broadcast %16 : vector<2x1xf32> to vector<2x128xf32>
      %c0_12 = arith.constant 0 : index
      %c0_13 = arith.constant 0 : index
      %18 = vector.load %arg5[%c0_12, %c0_13] : memref<2x128xf32, #tpu.memory_space<vmem>>, vector<2x128xf32>
      tpu.vector_store %arg5[%c0_12, %c0_13], %17 {strides = array<i32>} : memref<2x128xf32, #tpu.memory_space<vmem>>, vector<2x128xf32>,
    } else {
    }
    return
  }
  func.func @transform_0(%arg0: i32, %arg1: i32, %arg2: i32) -> (i32, i32) {
    %c1_i32 = arith.constant 1 : i32
    %0 = arith.muli %arg1, %c1_i32 : i32
    %1 = arith.addi %0, %arg2 : i32
    %c0_i32 = arith.constant 0 : i32
    %2 = arith.minsi %1, %c0_i32 : i32
    %c0_i32_0 = arith.constant 0 : i32
    return %arg0, %2 : i32, i32
  }
  func.func @transform_1(%arg0: i32, %arg1: i32, %arg2: i32) -> (i32, i32) {
    %c1_i32 = arith.constant 1 : i32
    %0 = arith.muli %arg1, %c1_i32 : i32
    %1 = arith.addi %0, %arg2 : i32
    %c0_i32 = arith.constant 0 : i32
    %2 = arith.minsi %1, %c0_i32 : i32
    %c0_i32_0 = arith.constant 0 : i32
    return %arg0, %2 : i32, i32
  }
  func.func @transform_2(%arg0: i32, %arg1: i32, %arg2: i32) -> (i32, i32) {
    %c0_i32 = arith.constant 0 : i32
    return %arg0, %arg1 : i32, i32
  }
}

</mosaic_0001>

<llo_original>
// kernel: tpu_custom_call.1
$region0: #{tpu_custom_call.1}
  #allocation0 [shape = 'u32[]', space=smem, size = 0x4, offset = 0x4, fixed_abs, tag = 'smem constant byte address 0x4 - core index']
  #allocation1 [shape = 'u32[144,128]{1,0:T(1,128)}', space=vmem, size = 0x12000, scoped, tag = 'internal scratch']
  #allocation2 [shape = 'f32[2,1]{1,0:T(2,128)}', space=vmem, size = 0x400, scoped, tag = 'scratch operand']
  %s0 = inlined_call_operand.hbm [shape: f32[2,1024], index: 0, kind: input, shape index: {}]
  %s1 = inlined_call_operand.hbm [shape: f32[2,1024], index: 1, kind: input, shape index: {}]
  %s2 = inlined_call_operand.hbm [shape: f32[2,128], index: 2, kind: output, shape index: {}]
  %s3 = sld [smem:[#allocation0]]
  $region34: #{tpu_custom_call.1} parent=0
    _
  %s5 = ssub.s32 1, %s3
  %s6 = scalar_select 0, %s5, %s3
  $region1: #{tpu_custom_call.1} parent=0
    #allocation3 [shape = 'u8[8192]{0}', space=vmem, size = 0x2000, scoped, tag = 'input window, operand 0, single buffered']
    #allocation4 [shape = 's32[1]{0}', space=sflag, size = 0x4, scoped, tag = 'scoped memory for tpu_custom_call.1']
    #allocation5 [shape = 's32[1]{0}', space=sflag, size = 0x4, scoped, tag = 'scoped memory for tpu_custom_call.1']
    #allocation6 [shape = 'u8[8192]{0}', space=vmem, size = 0x2000, scoped, tag = 'input window, operand 1, single buffered']
    #allocation7 [shape = 's32[1]{0}', space=sflag, size = 0x4, scoped, tag = 'scoped memory for tpu_custom_call.1']
    #allocation8 [shape = 'u8[1024]{0}', space=vmem, size = 0x400, scoped, tag = 'output window, operand 0, single buffered']
    %7 = vsyncpa [#allocation4], 0
    %8 = vsyncpa [#allocation7], 0
    %9 = vsyncpa [#allocation5], 0
    // Predicated region
    $region2: #{tpu_custom_call.1} parent=1 // pred_check
      _
    $region3: #{tpu_custom_call.1} parent=1 // pred_check_branch
      %11 = sbr.rel (0) target = $region5
    $region4: #{tpu_custom_call.1} parent=1 // pred_region
      %s12 = sadd.s32 0, 0
      %p13 = scmp.lt.s32.totalorder %s12, 0
      %s14 = scalar_select %p13, %s12, 0
      %s15 = smul.u32 8, %s14
      %s17 = ssub.s32 256, 256
      %18 = vsyncadd [#allocation4], %s17
      %s19 = smul.addr %s15, 32
      %s20 = scalar_lea.hbm %s0, %s19
      %s22 = sshll.u32 [#allocation3], 4
      %s23 = int_to_ptr.vmem [resolvable:$true] %s22
      %25 = dma.hbm_to_vmem [thread:$0]  %s20, 256, %s23, [#allocation4]
    $region5: #{tpu_custom_call.1} parent=1 // pred_fallthru
      _
    // Predicated region
    $region6: #{tpu_custom_call.1} parent=1 // pred_check
      _
    $region7: #{tpu_custom_call.1} parent=1 // pred_check_branch
      %27 = sbr.rel (0) target = $region9
    $region8: #{tpu_custom_call.1} parent=1 // pred_region
      %s28 = sadd.s32 0, 0
      %p29 = scmp.lt.s32.totalorder %s28, 0
      %s30 = scalar_select %p29, %s28, 0
      %s31 = smul.u32 8, %s30
      %s33 = ssub.s32 256, 256
      %34 = vsyncadd [#allocation7], %s33
      %s35 = smul.addr %s31, 32
      %s36 = scalar_lea.hbm %s1, %s35
      %s38 = sshll.u32 [#allocation6], 4
      %s39 = int_to_ptr.vmem [resolvable:$true] %s38
      %41 = dma.hbm_to_vmem [thread:$0]  %s36, 256, %s39, [#allocation7]
    $region9: #{tpu_custom_call.1} parent=1 // pred_fallthru
      _
    // Predicated region
    $region10: #{tpu_custom_call.1} parent=1 // pred_check
      _
    $region11: #{tpu_custom_call.1} parent=1 // pred_check_branch
      %43 = sbr.rel (0) target = $region13
    $region12: #{tpu_custom_call.1} parent=1 // pred_region
      %44 = dma.done [#allocation4], 256
    $region13: #{tpu_custom_call.1} parent=1 // pred_fallthru
      _
    // Predicated region
    $region14: #{tpu_custom_call.1} parent=1 // pred_check
      _
    $region15: #{tpu_custom_call.1} parent=1 // pred_check_branch
      %46 = sbr.rel (0) target = $region17
    $region16: #{tpu_custom_call.1} parent=1 // pred_region
      %47 = dma.done [#allocation7], 256
    $region17: #{tpu_custom_call.1} parent=1 // pred_fallthru
      _
    %s48 = sadd.s32 0, 0
    %p49 = scmp.lt.s32.totalorder %s48, 0
    %s50 = scalar_select %p49, %s48, 0
    %s51 = smul.u32 8, %s50
    %s52 = sadd.s32 0, 0
    %p53 = scmp.lt.s32.totalorder %s52, 0
    %s54 = scalar_select %p53, %s52, 0
    %s55 = smul.u32 8, %s54
    %p56 = scmp.eq.s32.totalorder 0, 0
    // Predicated region
    $region18: #{tpu_custom_call.1} parent=1 // pred_check
      %p57 = pneg %p56
    $region19: #{tpu_custom_call.1} parent=1 // pred_check_branch
      %59 = sbr.rel (%p57) target = $region21
    $region20: #{tpu_custom_call.1} parent=1 // pred_region
      %vm60 = vcmask 1024
      %61 = vst.msk [vmem:[#allocation2] sm:$0x3] %vm60, 0.0
    $region21: #{tpu_custom_call.1} parent=1 // pred_fallthru
      _
    %v62 = vld [vmem:[#allocation3] sm:$0xff]
    %v63 = vld [vmem:[#allocation3 + $0x8] sm:$0xff]
    %v64 = vld [vmem:[#allocation6] sm:$0xff]
    %v65 = vld [vmem:[#allocation6 + $0x8] sm:$0xff]
    %v66 = vsub.f32 %v62, %v64
    %v67 = vsub.f32 %v63, %v65
    %v68 = vmul.f32 %v66, %v66
    %v69 = vmul.f32 %v67, %v67
    %v70 = vld [vmem:[#allocation2] sm:$0x3]
    %v73 = vcombine.high %v68, %v68
    %v75 = vunpack.c.l.s4 1983009808
    %v76 = vunpack.c.0.s8 %v75
    %v77 = vlaneseq
    %v78 = vshrl.u32 %v77, 7
    %v79 = vsub.s32 %v76, %v78
    %v80 = vrot.slane %v68, %v79
    %v82 = vunpack.c.l.s4 1983009808
    %v83 = vunpack.c.0.s8 %v82
    %v84 = vlaneseq
    %v85 = vshrl.u32 %v84, 7
    %v86 = vsub.s32 %v83, %v85
    %v87 = vrot.slane %v73, %v86
    %v88 = vcombine.high %v80, %v80
    %v89 = vcombine.high %v87, %v87
    %v90 = vcombine.high %v69, %v69
    %v92 = vunpack.c.l.s4 1983009808
    %v93 = vunpack.c.0.s8 %v92
    %v94 = vlaneseq
    %v95 = vshrl.u32 %v94, 7
    %v96 = vsub.s32 %v93, %v95
    %v97 = vrot.slane %v69, %v96
    %v99 = vunpack.c.l.s4 1983009808
    %v100 = vunpack.c.0.s8 %v99
    %v101 = vlaneseq
    %v102 = vshrl.u32 %v101, 7
    %v103 = vsub.s32 %v100, %v102
    %v104 = vrot.slane %v90, %v103
    %v105 = vcombine.high %v97, %v97
    %v106 = vcombine.high %v104, %v104
    %vm115 = vcmask 1041408
    %v116 = vsel %vm115, %v80, 0.0
    %v117 = vsel %vm115, %v88, 0.0
    %v118 = vadd.f32 %v116, %v117
    %v119 = vsel %vm115, %v87, 0.0
    %v120 = vadd.f32 %v118, %v119
    %v121 = vsel %vm115, %v89, 0.0
    %v122 = vadd.f32 %v120, %v121
    %v123 = vsel %vm115, %v97, 0.0
    %v124 = vadd.f32 %v122, %v123
    %v125 = vsel %vm115, %v105, 0.0
    %v126 = vadd.f32 %v124, %v125
    %v127 = vsel %vm115, %v104, 0.0
    %v128 = vadd.f32 %v126, %v127
    %v129 = vsel %vm115, %v106, 0.0
    %v130 = vadd.f32 %v128, %v129
    %131 = vadd.xlane.f32.xlu0 %v130
    %v132 = vpop.xlane.xlu0 %131
    %v133 = vadd.f32 %v70, %v132
    %vm134 = vcmask 1024
    %135 = vst.msk [vmem:[#allocation2] sm:$0x3] %vm134, %v133
    // Predicated region
    $region22: #{tpu_custom_call.1} parent=1 // pred_check
      %p136 = pneg %p56
    $region23: #{tpu_custom_call.1} parent=1 // pred_check_branch
      %138 = sbr.rel (%p136) target = $region25
    $region24: #{tpu_custom_call.1} parent=1 // pred_region
      %v139 = vld [vmem:[#allocation2] sm:$0x3]
      %141 = vset.pattern.permute.xlu0 0
      %142 = vperm.xlu0 %141, %v139
      %v143 = vpop.permute.xlu0 %142
      %145 = vst [vmem:[#allocation8] sm:$0x3] %v143
    $region25: #{tpu_custom_call.1} parent=1 // pred_fallthru
      _
    // Predicated region
    $region26: #{tpu_custom_call.1} parent=1 // pred_check
      _
    $region27: #{tpu_custom_call.1} parent=1 // pred_check_branch
      %147 = sbr.rel (0) target = $region29
    $region28: #{tpu_custom_call.1} parent=1 // pred_region
      %s149 = ssub.s32 32, 32
      %150 = vsyncadd [#allocation5], %s149
      %s152 = sshll.u32 [#allocation8], 4
      %s153 = int_to_ptr.vmem [resolvable:$true] %s152
      %155 = dma.vmem_to_hbm [thread:$0]  %s153, 32, %s2, [#allocation5]
    $region29: #{tpu_custom_call.1} parent=1 // pred_fallthru
      _
    // Predicated region
    $region30: #{tpu_custom_call.1} parent=1 // pred_check
      _
    $region31: #{tpu_custom_call.1} parent=1 // pred_check_branch
      %157 = sbr.rel (0) target = $region33
    $region32: #{tpu_custom_call.1} parent=1 // pred_region
      %158 = dma.done [#allocation5], 32
    $region33: #{tpu_custom_call.1} parent=1 // pred_fallthru
      _
    %159 = vsyncpa [#allocation4], 1
    %160 = vsyncpa [#allocation7], 1
    %161 = vsyncpa [#allocation5], 1

</llo_original>
